<compile_context>
chip_gen: v6e
topology: v6e:2x2x1
jax: 0.10.0
libtpu: 0.0.40
codegen_flags: <defaults>
</compile_context>

<pallas_src>
import jax
import jax.numpy as jnp
from jax.experimental import pallas as pl
from jax.experimental.pallas import tpu as pltpu


def se_gate_kernel(g_ref, w_ref, x_hbm, o_ref, xbuf, sem):
    # g_ref : [Cin+1, 1]   gate input column (pre-ReLU) with a trailing 1 for the bias
    # w_ref : [Cout, Cin+1] conv weight with bias folded in as the last column
    # x_hbm : [Cout, HW]   feature map, left in HBM (memory_space=pl.ANY)
    # o_ref : [Cout, HW]   output block in VMEM
    # xbuf  : VMEM scratch [Cout, HW], sem: DMA semaphore

    # Kick off the 250 KB feature-map load; the gate compute below overlaps with it.
    cp = pltpu.make_async_copy(x_hbm, xbuf, sem)
    cp.start()

    g = jnp.maximum(g_ref[...], 0.0)                                  # ReLU (VPU), [Cin+1, 1]
    s = jnp.dot(w_ref[...], g, preferred_element_type=jnp.float32)    # MXU matvec, [Cout, 1]
    gate = jax.nn.sigmoid(s)                                          # EUP exp/recip, [Cout, 1]

    cp.wait()
    o_ref[...] = xbuf[...] * gate                                     # broadcast over lanes


def se_gate(x97, x95, weight, bias):
    """x97: [1, Cin, 1, 1], x95: [1, Cout, H, W], weight: [Cout, Cin, 1, 1], bias: [Cout]."""
    N, Cin, _, _ = x97.shape
    _, Cout, H, W = x95.shape
    assert N == 1, "module is specified for batch size 1"
    HW = H * W

    # One-time host-side folds (free reshapes + tiny concats, outside the kernel).
    w_aug = jnp.concatenate(
        [weight.reshape(Cout, Cin), bias.reshape(Cout, 1)], axis=1)        # [Cout, Cin+1]
    g_aug = jnp.concatenate(
        [x97.reshape(Cin, 1), jnp.ones((1, 1), dtype=x97.dtype)], axis=0)  # [Cin+1, 1]
    xf = x95.reshape(Cout, HW)                                             # [Cout, HW] free view

    out_flat = pl.pallas_call(
        se_gate_kernel,
        out_shape=jax.ShapeDtypeStruct((Cout, HW), x95.dtype),
        in_specs=[
            pl.BlockSpec(memory_space=pltpu.MemorySpace.VMEM),   # g_aug (tiny)
            pl.BlockSpec(memory_space=pltpu.MemorySpace.VMEM),   # w_aug (100 KB)
            pl.BlockSpec(memory_space=pl.ANY),                   # xf stays in HBM; manual copy
        ],
        out_specs=pl.BlockSpec(memory_space=pltpu.MemorySpace.VMEM),
        scratch_shapes=[
            pltpu.VMEM((Cout, HW), x95.dtype),                   # feature-map landing buffer
            pltpu.SemaphoreType.DMA,                             # completion semaphore
        ],
    )(g_aug, w_aug, xf)

    # Back to NCHW — a pure reshape (no transpose, no data movement).
    return out_flat.reshape(N, Cout, H, W)


def reference(x97, x95, weight, bias):
    g = jnp.maximum(x97.reshape(x97.shape[0], -1), 0.0)
    s = g @ weight.reshape(weight.shape[0], -1).T + bias[None, :]
    gate = jax.nn.sigmoid(s)[:, :, None, None]
    return gate * x95


if __name__ == "__main__":
    key = jax.random.PRNGKey(0)
    k1, k2, k3, k4 = jax.random.split(key, 4)

    N, Cin, Cout, H, W = 1, 80, 320, 14, 14

    x97 = jax.random.normal(k1, (N, Cin, 1, 1), dtype=jnp.float32)
    x95 = jax.random.normal(k2, (N, Cout, H, W), dtype=jnp.float32)

    # deterministic parameter init (PyTorch-like uniform fan-in scaling)
    fan_in = Cin
    bound = 1.0 / (fan_in ** 0.5)
    weight = jax.random.uniform(k3, (Cout, Cin, 1, 1), minval=-bound, maxval=bound,
                                dtype=jnp.float32)
    bias = jax.random.uniform(k4, (Cout,), minval=-bound, maxval=bound, dtype=jnp.float32)

    ref = jax.block_until_ready(reference(x97, x95, weight, bias))

    out = jax.block_until_ready(se_gate(x97, x95, weight, bias))

    assert out.shape == (N, Cout, H, W)
    assert jnp.allclose(out, ref, atol=1e-5, rtol=1e-5)

    print("KERNEL_OK")
</pallas_src>

<mosaic_0001>
module attributes {stable_mosaic.version = 11 : i64} {
  func.func @se_gate_kernel(%arg0: memref<81x1xf32, #tpu.memory_space<vmem>>, %arg1: memref<320x81xf32, #tpu.memory_space<vmem>>, %arg2: memref<320x196xf32, #tpu.memory_space<any>>, %arg3: memref<320x196xf32, #tpu.memory_space<vmem>>, %arg4: memref<320x196xf32, #tpu.memory_space<vmem>>, %arg5: memref<!tpu.dma_semaphore, #tpu.memory_space<semaphore_mem>>) attributes {dimension_semantics = [], scalar_prefetch = 0 : i64, scratch_operands = 2 : i64, tpu.core_type = #tpu.core_type<tc>} {
    tpu.enqueue_dma source(%arg2 : memref<320x196xf32, #tpu.memory_space<any>>) target(%arg4 : memref<320x196xf32, #tpu.memory_space<vmem>>) target_semaphore(%arg5 : memref<!tpu.dma_semaphore, #tpu.memory_space<semaphore_mem>>)
    %c0 = arith.constant 0 : index
    %c0_0 = arith.constant 0 : index
    %0 = vector.load %arg0[%c0, %c0_0] : memref<81x1xf32, #tpu.memory_space<vmem>>, vector<81x1xf32>
    %cst = arith.constant 0.000000e+00 : f32
    %1 = vector.broadcast %cst : f32 to vector<81x1xf32>
    %2 = arith.maximumf %0, %1 : vector<81x1xf32>
    %c0_1 = arith.constant 0 : index
    %c0_2 = arith.constant 0 : index
    %3 = vector.load %arg1[%c0_1, %c0_2] : memref<320x81xf32, #tpu.memory_space<vmem>>, vector<320x81xf32>
    %cst_3 = arith.constant dense<0.000000e+00> : vector<320x1xf32>
    %4 = tpu.matmul %3, %2, %cst_3 {dimension_numbers = #tpu.dot_dimension_numbers<[1], [0], [0], [1], [0, 0, 1, 1], [], []>} : vector<320x81xf32>, vector<81x1xf32>, vector<320x1xf32> -> vector<320x1xf32>
    %5 = arith.negf %4 : vector<320x1xf32>
    %6 = math.exp %5 : vector<320x1xf32>
    %cst_4 = arith.constant 1.000000e+00 : f32
    %7 = vector.broadcast %cst_4 : f32 to vector<320x1xf32>
    %8 = arith.addf %7, %6 : vector<320x1xf32>
    %9 = arith.divf %7, %8 : vector<320x1xf32>
    tpu.wait_dma2 semaphore(%arg5 : memref<!tpu.dma_semaphore, #tpu.memory_space<semaphore_mem>>) src(%arg2 : memref<320x196xf32, #tpu.memory_space<any>>) dst(%arg4 : memref<320x196xf32, #tpu.memory_space<vmem>>)
    %c0_5 = arith.constant 0 : index
    %c0_6 = arith.constant 0 : index
    %10 = vector.load %arg4[%c0_5, %c0_6] : memref<320x196xf32, #tpu.memory_space<vmem>>, vector<320x196xf32>
    %11 = vector.broadcast %9 : vector<320x1xf32> to vector<320x196xf32>
    %12 = arith.mulf %10, %11 : vector<320x196xf32>
    %c0_7 = arith.constant 0 : index
    %c0_8 = arith.constant 0 : index
    %13 = vector.load %arg3[%c0_7, %c0_8] : memref<320x196xf32, #tpu.memory_space<vmem>>, vector<320x196xf32>
    tpu.vector_store %arg3[%c0_7, %c0_8], %12 {strides = array<i32>} : memref<320x196xf32, #tpu.memory_space<vmem>>, vector<320x196xf32>,
    return
  }
}

</mosaic_0001>

<llo_original>
// kernel: tpu_custom_call.1
$region0: #{tpu_custom_call.1}
  #allocation0 [shape = 'u32[]', space=smem, size = 0x4, offset = 0x4, fixed_abs, tag = 'smem constant byte address 0x4 - core index']
  #allocation1 [shape = 'u32[144,128]{1,0:T(1,128)}', space=vmem, size = 0x12000, scoped, tag = 'internal scratch']
  #allocation2 [shape = 'f32[320,196]{1,0:T(8,128)}', space=vmem, size = 0x50000, scoped, tag = 'scratch operand']
  #allocation3 [shape = 's32[1]{0}', space=sflag, size = 0x4, scoped, tag = 'scratch operand']
  #allocation4 [shape = 's32[]', space=sflag, size = 0x4, offset = 0, fixed_abs, tag = 'sflag constant byte address 0x0 - dummy sync flag']
  %s0 = inlined_call_operand.vmem [shape: f32[81,1], index: 0, kind: input, shape index: {}]
  %s1 = inlined_call_operand.vmem [shape: f32[320,81], index: 1, kind: input, shape index: {}]
  %s2 = inlined_call_operand.vmem [shape: f32[320,196], index: 2, kind: input, shape index: {}]
  %s3 = inlined_call_operand.vmem [shape: f32[320,196], index: 3, kind: output, shape index: {}]
  %s4 = sld [smem:[#allocation0]]
  $region52: #{tpu_custom_call.1} parent=0
    _
  %s6 = ssub.s32 1, %s4
  %s7 = scalar_select 0, %s6, %s4
  // Predicated region
  $region2: #{tpu_custom_call.1} parent=0 // pred_check
    _
  $region3: #{tpu_custom_call.1} parent=0 // pred_check_branch
    %9 = sbr.rel (0) target = $region5
  $region4: #{tpu_custom_call.1} parent=0 // pred_region
    _
  $region5: #{tpu_custom_call.1} parent=0 // pred_fallthru
    _
  // Predicated region
  $region6: #{tpu_custom_call.1} parent=0 // pred_check
    _
  $region7: #{tpu_custom_call.1} parent=0 // pred_check_branch
    %11 = sbr.rel (0) target = $region9
  $region8: #{tpu_custom_call.1} parent=0 // pred_region
    _
  $region9: #{tpu_custom_call.1} parent=0 // pred_fallthru
    _
  %p13 = scmp.lt.u32.totalorder 640, 8
  %p14 = pneg %p13
  // Predicated region
  $region10: #{tpu_custom_call.1} parent=0 // pred_check
    _
  $region11: #{tpu_custom_call.1} parent=0 // pred_check_branch
    %16 = sbr.rel (%p13) target = $region13
  $region12: #{tpu_custom_call.1} parent=0 // pred_region
    %s32 = sand.u32 640, 7
    %p33 = scmp.eq.s32.totalorder %s32, 0
    // Predicated region
    $region25: #{tpu_custom_call.1} parent=12 // pred_check
      %p34 = pneg %p33
    $region26: #{tpu_custom_call.1} parent=12 // pred_check_branch
      %36 = sbr.rel (%p34) target = $region28
    $region27: #{tpu_custom_call.1} parent=12 // pred_region
      loop: start=0, step=1, limit=1
      $region29: #{tpu_custom_call.1} parent=27 // loop_pre_header
        _
      $region30: #{tpu_custom_call.1} parent=27 // loop_header
        %s38 = sphi 0, %s42
        %p39 = scmp.ge.s32.totalorder %s38, 1
        %s43 = sphi %s2, %s2
        %s44 = sphi [#allocation2], [#allocation2]
      $region31: #{tpu_custom_call.1} parent=27 // loop_header_branch
        %41 = sbr.rel (%p39) target = $region35
      $region32: #{tpu_custom_call.1} parent=27 // loop_body
        %v45 = vld [vmem:[%s43] sm:$0xff]
        %46 = vst [vmem:[%s44] sm:$0xff] %v45
        %v47 = vld [vmem:[%s43 + $0x8] sm:$0xff]
        %48 = vst [vmem:[%s44 + $0x8] sm:$0xff] %v47
        %v49 = vld [vmem:[%s43 + $0x10] sm:$0xff]
        %50 = vst [vmem:[%s44 + $0x10] sm:$0xff] %v49
        %v51 = vld [vmem:[%s43 + $0x18] sm:$0xff]
        %52 = vst [vmem:[%s44 + $0x18] sm:$0xff] %v51
        %v53 = vld [vmem:[%s43 + $0x20] sm:$0xff]
        %54 = vst [vmem:[%s44 + $0x20] sm:$0xff] %v53
        %v55 = vld [vmem:[%s43 + $0x28] sm:$0xff]
        %56 = vst [vmem:[%s44 + $0x28] sm:$0xff] %v55
        %v57 = vld [vmem:[%s43 + $0x30] sm:$0xff]
        %58 = vst [vmem:[%s44 + $0x30] sm:$0xff] %v57
        %v59 = vld [vmem:[%s43 + $0x38] sm:$0xff]
        %60 = vst [vmem:[%s44 + $0x38] sm:$0xff] %v59
        %v61 = vld [vmem:[%s43 + $0x40] sm:$0xff]
        %62 = vst [vmem:[%s44 + $0x40] sm:$0xff] %v61
        %v63 = vld [vmem:[%s43 + $0x48] sm:$0xff]
        %64 = vst [vmem:[%s44 + $0x48] sm:$0xff] %v63
        %v65 = vld [vmem:[%s43 + $0x50] sm:$0xff]
        %66 = vst [vmem:[%s44 + $0x50] sm:$0xff] %v65
        %v67 = vld [vmem:[%s43 + $0x58] sm:$0xff]
        %68 = vst [vmem:[%s44 + $0x58] sm:$0xff] %v67
        %v69 = vld [vmem:[%s43 + $0x60] sm:$0xff]
        %70 = vst [vmem:[%s44 + $0x60] sm:$0xff] %v69
        %v71 = vld [vmem:[%s43 + $0x68] sm:$0xff]
        %72 = vst [vmem:[%s44 + $0x68] sm:$0xff] %v71
        %v73 = vld [vmem:[%s43 + $0x70] sm:$0xff]
        %74 = vst [vmem:[%s44 + $0x70] sm:$0xff] %v73
        %v75 = vld [vmem:[%s43 + $0x78] sm:$0xff]
        %76 = vst [vmem:[%s44 + $0x78] sm:$0xff] %v75
        %v77 = vld [vmem:[%s43 + $0x80] sm:$0xff]
        %78 = vst [vmem:[%s44 + $0x80] sm:$0xff] %v77
        %v79 = vld [vmem:[%s43 + $0x88] sm:$0xff]
        %80 = vst [vmem:[%s44 + $0x88] sm:$0xff] %v79
        %v81 = vld [vmem:[%s43 + $0x90] sm:$0xff]
        %82 = vst [vmem:[%s44 + $0x90] sm:$0xff] %v81
        %v83 = vld [vmem:[%s43 + $0x98] sm:$0xff]
        %84 = vst [vmem:[%s44 + $0x98] sm:$0xff] %v83
        %v85 = vld [vmem:[%s43 + $0xa0] sm:$0xff]
        %86 = vst [vmem:[%s44 + $0xa0] sm:$0xff] %v85
        %v87 = vld [vmem:[%s43 + $0xa8] sm:$0xff]
        %88 = vst [vmem:[%s44 + $0xa8] sm:$0xff] %v87
        %v89 = vld [vmem:[%s43 + $0xb0] sm:$0xff]
        %90 = vst [vmem:[%s44 + $0xb0] sm:$0xff] %v89
        %v91 = vld [vmem:[%s43 + $0xb8] sm:$0xff]
        %92 = vst [vmem:[%s44 + $0xb8] sm:$0xff] %v91
        %v93 = vld [vmem:[%s43 + $0xc0] sm:$0xff]
        %94 = vst [vmem:[%s44 + $0xc0] sm:$0xff] %v93
        %v95 = vld [vmem:[%s43 + $0xc8] sm:$0xff]
        %96 = vst [vmem:[%s44 + $0xc8] sm:$0xff] %v95
        %v97 = vld [vmem:[%s43 + $0xd0] sm:$0xff]
        %98 = vst [vmem:[%s44 + $0xd0] sm:$0xff] %v97
        %v99 = vld [vmem:[%s43 + $0xd8] sm:$0xff]
        %100 = vst [vmem:[%s44 + $0xd8] sm:$0xff] %v99
        %v101 = vld [vmem:[%s43 + $0xe0] sm:$0xff]
        %102 = vst [vmem:[%s44 + $0xe0] sm:$0xff] %v101
        %v103 = vld [vmem:[%s43 + $0xe8] sm:$0xff]
        %104 = vst [vmem:[%s44 + $0xe8] sm:$0xff] %v103
        %v105 = vld [vmem:[%s43 + $0xf0] sm:$0xff]
        %106 = vst [vmem:[%s44 + $0xf0] sm:$0xff] %v105
        %v107 = vld [vmem:[%s43 + $0xf8] sm:$0xff]
        %108 = vst [vmem:[%s44 + $0xf8] sm:$0xff] %v107
        %v109 = vld [vmem:[%s43 + $0x100] sm:$0xff]
        %110 = vst [vmem:[%s44 + $0x100] sm:$0xff] %v109
        %v111 = vld [vmem:[%s43 + $0x108] sm:$0xff]
        %112 = vst [vmem:[%s44 + $0x108] sm:$0xff] %v111
        %v113 = vld [vmem:[%s43 + $0x110] sm:$0xff]
        %114 = vst [vmem:[%s44 + $0x110] sm:$0xff] %v113
        %v115 = vld [vmem:[%s43 + $0x118] sm:$0xff]
        %116 = vst [vmem:[%s44 + $0x118] sm:$0xff] %v115
        %v117 = vld [vmem:[%s43 + $0x120] sm:$0xff]
        %118 = vst [vmem:[%s44 + $0x120] sm:$0xff] %v117
        %v119 = vld [vmem:[%s43 + $0x128] sm:$0xff]
        %120 = vst [vmem:[%s44 + $0x128] sm:$0xff] %v119
        %v121 = vld [vmem:[%s43 + $0x130] sm:$0xff]
        %122 = vst [vmem:[%s44 + $0x130] sm:$0xff] %v121
        %v123 = vld [vmem:[%s43 + $0x138] sm:$0xff]
        %124 = vst [vmem:[%s44 + $0x138] sm:$0xff] %v123
        %v125 = vld [vmem:[%s43 + $0x140] sm:$0xff]
        %126 = vst [vmem:[%s44 + $0x140] sm:$0xff] %v125
        %v127 = vld [vmem:[%s43 + $0x148] sm:$0xff]
        %128 = vst [vmem:[%s44 + $0x148] sm:$0xff] %v127
        %v129 = vld [vmem:[%s43 + $0x150] sm:$0xff]
        %130 = vst [vmem:[%s44 + $0x150] sm:$0xff] %v129
        %v131 = vld [vmem:[%s43 + $0x158] sm:$0xff]
        %132 = vst [vmem:[%s44 + $0x158] sm:$0xff] %v131
        %v133 = vld [vmem:[%s43 + $0x160] sm:$0xff]
        %134 = vst [vmem:[%s44 + $0x160] sm:$0xff] %v133
        %v135 = vld [vmem:[%s43 + $0x168] sm:$0xff]
        %136 = vst [vmem:[%s44 + $0x168] sm:$0xff] %v135
        %v137 = vld [vmem:[%s43 + $0x170] sm:$0xff]
        %138 = vst [vmem:[%s44 + $0x170] sm:$0xff] %v137
        %v139 = vld [vmem:[%s43 + $0x178] sm:$0xff]
        %140 = vst [vmem:[%s44 + $0x178] sm:$0xff] %v139
        %v141 = vld [vmem:[%s43 + $0x180] sm:$0xff]
        %142 = vst [vmem:[%s44 + $0x180] sm:$0xff] %v141
        %v143 = vld [vmem:[%s43 + $0x188] sm:$0xff]
        %144 = vst [vmem:[%s44 + $0x188] sm:$0xff] %v143
        %v145 = vld [vmem:[%s43 + $0x190] sm:$0xff]
        %146 = vst [vmem:[%s44 + $0x190] sm:$0xff] %v145
        %v147 = vld [vmem:[%s43 + $0x198] sm:$0xff]
        %148 = vst [vmem:[%s44 + $0x198] sm:$0xff] %v147
        %v149 = vld [vmem:[%s43 + $0x1a0] sm:$0xff]
        %150 = vst [vmem:[%s44 + $0x1a0] sm:$0xff] %v149
        %v151 = vld [vmem:[%s43 + $0x1a8] sm:$0xff]
        %152 = vst [vmem:[%s44 + $0x1a8] sm:$0xff] %v151
        %v153 = vld [vmem:[%s43 + $0x1b0] sm:$0xff]
        %154 = vst [vmem:[%s44 + $0x1b0] sm:$0xff] %v153
        %v155 = vld [vmem:[%s43 + $0x1b8] sm:$0xff]
        %156 = vst [vmem:[%s44 + $0x1b8] sm:$0xff] %v155
        %v157 = vld [vmem:[%s43 + $0x1c0] sm:$0xff]
        %158 = vst [vmem:[%s44 + $0x1c0] sm:$0xff] %v157
        %v159 = vld [vmem:[%s43 + $0x1c8] sm:$0xff]
        %160 = vst [vmem:[%s44 + $0x1c8] sm:$0xff] %v159
        %v161 = vld [vmem:[%s43 + $0x1d0] sm:$0xff]
        %162 = vst [vmem:[%s44 + $0x1d0] sm:$0xff] %v161
        %v163 = vld [vmem:[%s43 + $0x1d8] sm:$0xff]
        %164 = vst [vmem:[%s44 + $0x1d8] sm:$0xff] %v163
        %v165 = vld [vmem:[%s43 + $0x1e0] sm:$0xff]
        %166 = vst [vmem:[%s44 + $0x1e0] sm:$0xff] %v165
        %v167 = vld [vmem:[%s43 + $0x1e8] sm:$0xff]
        %168 = vst [vmem:[%s44 + $0x1e8] sm:$0xff] %v167
        %v169 = vld [vmem:[%s43 + $0x1f0] sm:$0xff]
        %170 = vst [vmem:[%s44 + $0x1f0] sm:$0xff] %v169
        %v171 = vld [vmem:[%s43 + $0x1f8] sm:$0xff]
        %172 = vst [vmem:[%s44 + $0x1f8] sm:$0xff] %v171
        %v173 = vld [vmem:[%s43 + $0x200] sm:$0xff]
        %174 = vst [vmem:[%s44 + $0x200] sm:$0xff] %v173
        %v175 = vld [vmem:[%s43 + $0x208] sm:$0xff]
        %176 = vst [vmem:[%s44 + $0x208] sm:$0xff] %v175
        %v177 = vld [vmem:[%s43 + $0x210] sm:$0xff]
        %178 = vst [vmem:[%s44 + $0x210] sm:$0xff] %v177
        %v179 = vld [vmem:[%s43 + $0x218] sm:$0xff]
        %180 = vst [vmem:[%s44 + $0x218] sm:$0xff] %v179
        %v181 = vld [vmem:[%s43 + $0x220] sm:$0xff]
        %182 = vst [vmem:[%s44 + $0x220] sm:$0xff] %v181
        %v183 = vld [vmem:[%s43 + $0x228] sm:$0xff]
        %184 = vst [vmem:[%s44 + $0x228] sm:$0xff] %v183
        %v185 = vld [vmem:[%s43 + $0x230] sm:$0xff]
        %186 = vst [vmem:[%s44 + $0x230] sm:$0xff] %v185
        %v187 = vld [vmem:[%s43 + $0x238] sm:$0xff]
        %188 = vst [vmem:[%s44 + $0x238] sm:$0xff] %v187
        %v189 = vld [vmem:[%s43 + $0x240] sm:$0xff]
        %190 = vst [vmem:[%s44 + $0x240] sm:$0xff] %v189
        %v191 = vld [vmem:[%s43 + $0x248] sm:$0xff]
        %192 = vst [vmem:[%s44 + $0x248] sm:$0xff] %v191
        %v193 = vld [vmem:[%s43 + $0x250] sm:$0xff]
        %194 = vst [vmem:[%s44 + $0x250] sm:$0xff] %v193
        %v195 = vld [vmem:[%s43 + $0x258] sm:$0xff]
        %196 = vst [vmem:[%s44 + $0x258] sm:$0xff] %v195
        %v197 = vld [vmem:[%s43 + $0x260] sm:$0xff]
        %198 = vst [vmem:[%s44 + $0x260] sm:$0xff] %v197
        %v199 = vld [vmem:[%s43 + $0x268] sm:$0xff]
        %200 = vst [vmem:[%s44 + $0x268] sm:$0xff] %v199
        %v201 = vld [vmem:[%s43 + $0x270] sm:$0xff]
        %202 = vst [vmem:[%s44 + $0x270] sm:$0xff] %v201
        %v203 = vld [vmem:[%s43 + $0x278] sm:$0xff]
        %204 = vst [vmem:[%s44 + $0x278] sm:$0xff] %v203
      $region33: #{tpu_custom_call.1} parent=27 // loop_footer
        %s42 = sadd.s32 1, %s38
      $region34: #{tpu_custom_call.1} parent=27 // loop_footer_branch
        %37 = sbr.rel target = $region30
      $region35: #{tpu_custom_call.1} parent=27 // loop_exit
        _
    $region28: #{tpu_custom_call.1} parent=12 // pred_fallthru
      _
    %p205 = pneg %p33
    // Predicated region
    $region36: #{tpu_custom_call.1} parent=12 // pred_check
      _
    $region37: #{tpu_custom_call.1} parent=12 // pred_check_branch
      %207 = sbr.rel (%p33) target = $region39
    $region38: #{tpu_custom_call.1} parent=12 // pred_region
      %s208 = sand.u32 640, 7
    $region39: #{tpu_custom_call.1} parent=12 // pred_fallthru
      _
  $region13: #{tpu_custom_call.1} parent=0 // pred_fallthru
    _
  // Predicated region
  $region14: #{tpu_custom_call.1} parent=0 // pred_check
    %p17 = pneg %p13
  $region15: #{tpu_custom_call.1} parent=0 // pred_check_branch
    %19 = sbr.rel (%p17) target = $region17
  $region16: #{tpu_custom_call.1} parent=0 // pred_region
    %s20 = sshll.u32 1, 640
    %s21 = ssub.s32 %s20, 1
    loop: start=0, step=1, limit=1
    $region18: #{tpu_custom_call.1} parent=16 // loop_pre_header
      _
    $region19: #{tpu_custom_call.1} parent=16 // loop_header
      %s23 = sphi 0, %s27
      %p24 = scmp.ge.s32.totalorder %s23, 1
      %s28 = sphi %s2, %s2
      %s29 = sphi [#allocation2], [#allocation2]
    $region20: #{tpu_custom_call.1} parent=16 // loop_header_branch
      %26 = sbr.rel (%p24) target = $region24
    $region21: #{tpu_custom_call.1} parent=16 // loop_body
      %v30 = vld [vmem:[%s28] sm:%s21]
      %31 = vst [vmem:[%s29] sm:%s21] %v30
    $region22: #{tpu_custom_call.1} parent=16 // loop_footer
      %s27 = sadd.s32 1, %s23
    $region23: #{tpu_custom_call.1} parent=16 // loop_footer_branch
      %22 = sbr.rel target = $region19
    $region24: #{tpu_custom_call.1} parent=16 // loop_exit
      _
  $region17: #{tpu_custom_call.1} parent=0 // pred_fallthru
    _
  // Predicated region
  $region40: #{tpu_custom_call.1} parent=0 // pred_check
    _
  $region41: #{tpu_custom_call.1} parent=0 // pred_check_branch
    %211 = sbr.rel (0) target = $region43
  $region42: #{tpu_custom_call.1} parent=0 // pred_region
    %212 = vsyncadd [#allocation3], 10240
  $region43: #{tpu_custom_call.1} parent=0 // pred_fallthru
    _
  %v213 = vld [vmem:[%s0] sm:$0xff]
  %v214 = vld [vmem:[%s0 + $0x8] sm:$0xff]
  %v215 = vld [vmem:[%s0 + $0x10] sm:$0xff]
  %v216 = vld [vmem:[%s0 + $0x18] sm:$0xff]
  %v217 = vld [vmem:[%s0 + $0x20] sm:$0xff]
  %v218 = vld [vmem:[%s0 + $0x28] sm:$0xff]
  %v219 = vld [vmem:[%s0 + $0x30] sm:$0xff]
  %v220 = vld [vmem:[%s0 + $0x38] sm:$0xff]
  %v221 = vld [vmem:[%s0 + $0x40] sm:$0xff]
  %v222 = vld [vmem:[%s0 + $0x48] sm:$0xff]
  %v223 = vld [vmem:[%s0 + $0x50] sm:$0x1]
  %v224 = vmax.f32 %v213, 0.0
  %v225 = vmax.f32 %v214, 0.0
  %v226 = vmax.f32 %v215, 0.0
  %v227 = vmax.f32 %v216, 0.0
  %v228 = vmax.f32 %v217, 0.0
  %v229 = vmax.f32 %v218, 0.0
  %v230 = vmax.f32 %v219, 0.0
  %v231 = vmax.f32 %v220, 0.0
  %v232 = vmax.f32 %v221, 0.0
  %v233 = vmax.f32 %v222, 0.0
  %v234 = vmax.f32 %v223, 0.0
  %v235 = vld [vmem:[%s1] sm:$0xff]
  %v236 = vld [vmem:[%s1 + $0x8] sm:$0xff]
  %v237 = vld [vmem:[%s1 + $0x10] sm:$0xff]
  %v238 = vld [vmem:[%s1 + $0x18] sm:$0xff]
  %v239 = vld [vmem:[%s1 + $0x20] sm:$0xff]
  %v240 = vld [vmem:[%s1 + $0x28] sm:$0xff]
  %v241 = vld [vmem:[%s1 + $0x30] sm:$0xff]
  %v242 = vld [vmem:[%s1 + $0x38] sm:$0xff]
  %v243 = vld [vmem:[%s1 + $0x40] sm:$0xff]
  %v244 = vld [vmem:[%s1 + $0x48] sm:$0xff]
  %v245 = vld [vmem:[%s1 + $0x50] sm:$0xff]
  %v246 = vld [vmem:[%s1 + $0x58] sm:$0xff]
  %v247 = vld [vmem:[%s1 + $0x60] sm:$0xff]
  %v248 = vld [vmem:[%s1 + $0x68] sm:$0xff]
  %v249 = vld [vmem:[%s1 + $0x70] sm:$0xff]
  %v250 = vld [vmem:[%s1 + $0x78] sm:$0xff]
  %v251 = vld [vmem:[%s1 + $0x80] sm:$0xff]
  %v252 = vld [vmem:[%s1 + $0x88] sm:$0xff]
  %v253 = vld [vmem:[%s1 + $0x90] sm:$0xff]
  %v254 = vld [vmem:[%s1 + $0x98] sm:$0xff]
  %v255 = vld [vmem:[%s1 + $0xa0] sm:$0xff]
  %v256 = vld [vmem:[%s1 + $0xa8] sm:$0xff]
  %v257 = vld [vmem:[%s1 + $0xb0] sm:$0xff]
  %v258 = vld [vmem:[%s1 + $0xb8] sm:$0xff]
  %v259 = vld [vmem:[%s1 + $0xc0] sm:$0xff]
  %v260 = vld [vmem:[%s1 + $0xc8] sm:$0xff]
  %v261 = vld [vmem:[%s1 + $0xd0] sm:$0xff]
  %v262 = vld [vmem:[%s1 + $0xd8] sm:$0xff]
  %v263 = vld [vmem:[%s1 + $0xe0] sm:$0xff]
  %v264 = vld [vmem:[%s1 + $0xe8] sm:$0xff]
  %v265 = vld [vmem:[%s1 + $0xf0] sm:$0xff]
  %v266 = vld [vmem:[%s1 + $0xf8] sm:$0xff]
  %v267 = vld [vmem:[%s1 + $0x100] sm:$0xff]
  %v268 = vld [vmem:[%s1 + $0x108] sm:$0xff]
  %v269 = vld [vmem:[%s1 + $0x110] sm:$0xff]
  %v270 = vld [vmem:[%s1 + $0x118] sm:$0xff]
  %v271 = vld [vmem:[%s1 + $0x120] sm:$0xff]
  %v272 = vld [vmem:[%s1 + $0x128] sm:$0xff]
  %v273 = vld [vmem:[%s1 + $0x130] sm:$0xff]
  %v274 = vld [vmem:[%s1 + $0x138] sm:$0xff]
  %vm275 = vcmask 662528
  %v277 = vsel %vm275, %v235, 0
  %v280 = vsel %vm275, %v236, 0
  %v283 = vsel %vm275, %v237, 0
  %v286 = vsel %vm275, %v238, 0
  %v289 = vsel %vm275, %v239, 0
  %v292 = vsel %vm275, %v240, 0
  %v295 = vsel %vm275, %v241, 0
  %v298 = vsel %vm275, %v242, 0
  %v301 = vsel %vm275, %v243, 0
  %v304 = vsel %vm275, %v244, 0
  %v307 = vsel %vm275, %v245, 0
  %v310 = vsel %vm275, %v246, 0
  %v313 = vsel %vm275, %v247, 0
  %v316 = vsel %vm275, %v248, 0
  %v319 = vsel %vm275, %v249, 0
  %v322 = vsel %vm275, %v250, 0
  %v325 = vsel %vm275, %v251, 0
  %v328 = vsel %vm275, %v252, 0
  %v331 = vsel %vm275, %v253, 0
  %v334 = vsel %vm275, %v254, 0
  %v337 = vsel %vm275, %v255, 0
  %v340 = vsel %vm275, %v256, 0
  %v343 = vsel %vm275, %v257, 0
  %v346 = vsel %vm275, %v258, 0
  %v349 = vsel %vm275, %v259, 0
  %v352 = vsel %vm275, %v260, 0
  %v355 = vsel %vm275, %v261, 0
  %v358 = vsel %vm275, %v262, 0
  %v361 = vsel %vm275, %v263, 0
  %v364 = vsel %vm275, %v264, 0
  %v367 = vsel %vm275, %v265, 0
  %v370 = vsel %vm275, %v266, 0
  %v373 = vsel %vm275, %v267, 0
  %v376 = vsel %vm275, %v268, 0
  %v379 = vsel %vm275, %v269, 0
  %v382 = vsel %vm275, %v270, 0
  %v385 = vsel %vm275, %v271, 0
  %v388 = vsel %vm275, %v272, 0
  %v391 = vsel %vm275, %v273, 0
  %v394 = vsel %vm275, %v274, 0
  %vm396 = vcmask 1040384
  %v398 = vsel %vm396, %v234, 0
  %400 = vmatprep.subr.mxu0 0.0
  %401 = vmatpush1.msra.mxu0 0.0
  %402 = vmatprep.subr.mxu0 0.0
  %403 = vmatpush1.msra.mxu0 0.0
  %404 = vmatprep.subr.mxu0 0.0
  %405 = vmatpush1.msra.mxu0 0.0
  %406 = vmatprep.subr.mxu0 0.0
  %407 = vmatpush1.msra.mxu0 0.0
  %408 = vmatprep.subr.mxu0 0.0
  %409 = vmatpush1.msra.mxu0 0.0
  %410 = vmatprep.subr.mxu0 0.0
  %411 = vmatpush1.msra.mxu0 %v398
  %412 = vmatprep.subr.mxu0 0.0
  %413 = vmatpush1.msra.mxu0 %v233
  %414 = vmatprep.subr.mxu0 0.0
  %415 = vmatpush1.msra.mxu0 %v232
  %416 = vmatprep.subr.mxu0 0.0
  %417 = vmatpush1.msra.mxu0 %v231
  %418 = vmatprep.subr.mxu0 0.0
  %419 = vmatpush1.msra.mxu0 %v230
  %420 = vmatprep.subr.mxu0 0.0
  %421 = vmatpush1.msra.mxu0 %v229
  %422 = vmatprep.subr.mxu0 0.0
  %423 = vmatpush1.msra.mxu0 %v228
  %424 = vmatprep.subr.mxu0 0.0
  %425 = vmatpush1.msra.mxu0 %v227
  %426 = vmatprep.subr.mxu0 0.0
  %427 = vmatpush1.msra.mxu0 %v226
  %428 = vmatprep.subr.mxu0 0.0
  %429 = vmatpush1.msra.mxu0 %v225
  %430 = vmatprep.subr.mxu0 0.0
  %431 = vmatpush1.msra.mxu0 %v224
  %432 = vmatprep.subr.mxu0 0.0
  %433 = vmatpush2.msra.mxu0 0.0
  %434 = vmatprep.subr.mxu0 0.0
  %435 = vmatpush2.msra.mxu0 0.0
  %436 = vmatprep.subr.mxu0 0.0
  %437 = vmatpush2.msra.mxu0 0.0
  %438 = vmatprep.subr.mxu0 0.0
  %439 = vmatpush2.msra.mxu0 0.0
  %440 = vmatprep.subr.mxu0 0.0
  %441 = vmatpush2.msra.mxu0 0.0
  %442 = vmatprep.subr.mxu0 0.0
  %443 = vmatpush2.msra.mxu0 0.0
  %444 = vmatprep.subr.mxu0 0.0
  %445 = vmatpush2.msra.mxu0 0.0
  %446 = vmatprep.subr.mxu0 0.0
  %447 = vmatpush2.msra.mxu0 0.0
  %448 = vmatprep.subr.mxu0 0.0
  %449 = vmatpush2.msra.mxu0 0.0
  %450 = vmatprep.subr.mxu0 0.0
  %451 = vmatpush2.msra.mxu0 0.0
  %452 = vmatprep.subr.mxu0 0.0
  %453 = vmatpush2.msra.mxu0 0.0
  %454 = vmatprep.subr.mxu0 0.0
  %455 = vmatpush2.msra.mxu0 0.0
  %456 = vmatprep.subr.mxu0 0.0
  %457 = vmatpush2.msra.mxu0 0.0
  %458 = vmatprep.subr.mxu0 0.0
  %459 = vmatpush2.msra.mxu0 0.0
  %460 = vmatprep.subr.mxu0 0.0
  %461 = vmatpush2.msra.mxu0 0.0
  %462 = vmatprep.subr.mxu0 0.0
  %463 = vmatpush2.msra.mxu0 0.0
  %464 = vmatprep.mubr.f32.mxu0 0.0
  %465 = vmatmul.mubr.f32.gmra.mxu0 %v277
  %v466 = vpop.f32.mrf.mxu0
  %v467 = vadd.f32 0.0, %v466
  %v468 = vpop.f32.mrf.mxu0
  %469 = vmatprep.mubr.f32.mxu0 0.0
  %470 = vmatmul.mubr.f32.gmra.mxu0 %v280
  %v471 = vpop.f32.mrf.mxu0
  %v472 = vadd.f32 0.0, %v471
  %v473 = vpop.f32.mrf.mxu0
  %474 = vmatprep.mubr.f32.mxu0 0.0
  %475 = vmatmul.mubr.f32.gmra.mxu0 %v283
  %v476 = vpop.f32.mrf.mxu0
  %v477 = vadd.f32 0.0, %v476
  %v478 = vpop.f32.mrf.mxu0
  %479 = vmatprep.mubr.f32.mxu0 0.0
  %480 = vmatmul.mubr.f32.gmra.mxu0 %v286
  %v481 = vpop.f32.mrf.mxu0
  %v482 = vadd.f32 0.0, %v481
  %v483 = vpop.f32.mrf.mxu0
  %484 = vmatprep.mubr.f32.mxu0 0.0
  %485 = vmatmul.mubr.f32.gmra.mxu0 %v289
  %v486 = vpop.f32.mrf.mxu0
  %v487 = vadd.f32 0.0, %v486
  %v488 = vpop.f32.mrf.mxu0
  %489 = vmatprep.mubr.f32.mxu0 0.0
  %490 = vmatmul.mubr.f32.gmra.mxu0 %v292
  %v491 = vpop.f32.mrf.mxu0
  %v492 = vadd.f32 0.0, %v491
  %v493 = vpop.f32.mrf.mxu0
  %494 = vmatprep.mubr.f32.mxu0 0.0
  %495 = vmatmul.mubr.f32.gmra.mxu0 %v295
  %v496 = vpop.f32.mrf.mxu0
  %v497 = vadd.f32 0.0, %v496
  %v498 = vpop.f32.mrf.mxu0
  %499 = vmatprep.mubr.f32.mxu0 0.0
  %500 = vmatmul.mubr.f32.gmra.mxu0 %v298
  %v501 = vpop.f32.mrf.mxu0
  %v502 = vadd.f32 0.0, %v501
  %v503 = vpop.f32.mrf.mxu0
  %504 = vmatprep.mubr.f32.mxu0 0.0
  %505 = vmatmul.mubr.f32.gmra.mxu0 %v301
  %v506 = vpop.f32.mrf.mxu0
  %v507 = vadd.f32 0.0, %v506
  %v508 = vpop.f32.mrf.mxu0
  %509 = vmatprep.mubr.f32.mxu0 0.0
  %510 = vmatmul.mubr.f32.gmra.mxu0 %v304
  %v511 = vpop.f32.mrf.mxu0
  %v512 = vadd.f32 0.0, %v511
  %v513 = vpop.f32.mrf.mxu0
  %514 = vmatprep.mubr.f32.mxu0 0.0
  %515 = vmatmul.mubr.f32.gmra.mxu0 %v307
  %v516 = vpop.f32.mrf.mxu0
  %v517 = vadd.f32 0.0, %v516
  %v518 = vpop.f32.mrf.mxu0
  %519 = vmatprep.mubr.f32.mxu0 0.0
  %520 = vmatmul.mubr.f32.gmra.mxu0 %v310
  %v521 = vpop.f32.mrf.mxu0
  %v522 = vadd.f32 0.0, %v521
  %v523 = vpop.f32.mrf.mxu0
  %524 = vmatprep.mubr.f32.mxu0 0.0
  %525 = vmatmul.mubr.f32.gmra.mxu0 %v313
  %v526 = vpop.f32.mrf.mxu0
  %v527 = vadd.f32 0.0, %v526
  %v528 = vpop.f32.mrf.mxu0
  %529 = vmatprep.mubr.f32.mxu0 0.0
  %530 = vmatmul.mubr.f32.gmra.mxu0 %v316
  %v531 = vpop.f32.mrf.mxu0
  %v532 = vadd.f32 0.0, %v531
  %v533 = vpop.f32.mrf.mxu0
  %534 = vmatprep.mubr.f32.mxu0 0.0
  %535 = vmatmul.mubr.f32.gmra.mxu0 %v319
  %v536 = vpop.f32.mrf.mxu0
  %v537 = vadd.f32 0.0, %v536
  %v538 = vpop.f32.mrf.mxu0
  %539 = vmatprep.mubr.f32.mxu0 0.0
  %540 = vmatmul.mubr.f32.gmra.mxu0 %v322
  %v541 = vpop.f32.mrf.mxu0
  %v542 = vadd.f32 0.0, %v541
  %v543 = vpop.f32.mrf.mxu0
  %544 = vmatprep.mubr.f32.mxu0 0.0
  %545 = vmatmul.mubr.f32.gmra.mxu0 %v325
  %v546 = vpop.f32.mrf.mxu0
  %v547 = vadd.f32 0.0, %v546
  %v548 = vpop.f32.mrf.mxu0
  %549 = vmatprep.mubr.f32.mxu0 0.0
  %550 = vmatmul.mubr.f32.gmra.mxu0 %v328
  %v551 = vpop.f32.mrf.mxu0
  %v552 = vadd.f32 0.0, %v551
  %v553 = vpop.f32.mrf.mxu0
  %554 = vmatprep.mubr.f32.mxu0 0.0
  %555 = vmatmul.mubr.f32.gmra.mxu0 %v331
  %v556 = vpop.f32.mrf.mxu0
  %v557 = vadd.f32 0.0, %v556
  %v558 = vpop.f32.mrf.mxu0
  %559 = vmatprep.mubr.f32.mxu0 0.0
  %560 = vmatmul.mubr.f32.gmra.mxu0 %v334
  %v561 = vpop.f32.mrf.mxu0
  %v562 = vadd.f32 0.0, %v561
  %v563 = vpop.f32.mrf.mxu0
  %564 = vmatprep.mubr.f32.mxu0 0.0
  %565 = vmatmul.mubr.f32.gmra.mxu0 %v337
  %v566 = vpop.f32.mrf.mxu0
  %v567 = vadd.f32 0.0, %v566
  %v568 = vpop.f32.mrf.mxu0
  %569 = vmatprep.mubr.f32.mxu0 0.0
  %570 = vmatmul.mubr.f32.gmra.mxu0 %v340
  %v571 = vpop.f32.mrf.mxu0
  %v572 = vadd.f32 0.0, %v571
  %v573 = vpop.f32.mrf.mxu0
  %574 = vmatprep.mubr.f32.mxu0 0.0
  %575 = vmatmul.mubr.f32.gmra.mxu0 %v343
  %v576 = vpop.f32.mrf.mxu0
  %v577 = vadd.f32 0.0, %v576
  %v578 = vpop.f32.mrf.mxu0
  %579 = vmatprep.mubr.f32.mxu0 0.0
  %580 = vmatmul.mubr.f32.gmra.mxu0 %v346
  %v581 = vpop.f32.mrf.mxu0
  %v582 = vadd.f32 0.0, %v581
  %v583 = vpop.f32.mrf.mxu0
  %584 = vmatprep.mubr.f32.mxu0 0.0
  %585 = vmatmul.mubr.f32.gmra.mxu0 %v349
  %v586 = vpop.f32.mrf.mxu0
  %v587 = vadd.f32 0.0, %v586
  %v588 = vpop.f32.mrf.mxu0
  %589 = vmatprep.mubr.f32.mxu0 0.0
  %590 = vmatmul.mubr.f32.gmra.mxu0 %v352
  %v591 = vpop.f32.mrf.mxu0
  %v592 = vadd.f32 0.0, %v591
  %v593 = vpop.f32.mrf.mxu0
  %594 = vmatprep.mubr.f32.mxu0 0.0
  %595 = vmatmul.mubr.f32.gmra.mxu0 %v355
  %v596 = vpop.f32.mrf.mxu0
  %v597 = vadd.f32 0.0, %v596
  %v598 = vpop.f32.mrf.mxu0
  %599 = vmatprep.mubr.f32.mxu0 0.0
  %600 = vmatmul.mubr.f32.gmra.mxu0 %v358
  %v601 = vpop.f32.mrf.mxu0
  %v602 = vadd.f32 0.0, %v601
  %v603 = vpop.f32.mrf.mxu0
  %604 = vmatprep.mubr.f32.mxu0 0.0
  %605 = vmatmul.mubr.f32.gmra.mxu0 %v361
  %v606 = vpop.f32.mrf.mxu0
  %v607 = vadd.f32 0.0, %v606
  %v608 = vpop.f32.mrf.mxu0
  %609 = vmatprep.mubr.f32.mxu0 0.0
  %610 = vmatmul.mubr.f32.gmra.mxu0 %v364
  %v611 = vpop.f32.mrf.mxu0
  %v612 = vadd.f32 0.0, %v611
  %v613 = vpop.f32.mrf.mxu0
  %614 = vmatprep.mubr.f32.mxu0 0.0
  %615 = vmatmul.mubr.f32.gmra.mxu0 %v367
  %v616 = vpop.f32.mrf.mxu0
  %v617 = vadd.f32 0.0, %v616
  %v618 = vpop.f32.mrf.mxu0
  %619 = vmatprep.mubr.f32.mxu0 0.0
  %620 = vmatmul.mubr.f32.gmra.mxu0 %v370
  %v621 = vpop.f32.mrf.mxu0
  %v622 = vadd.f32 0.0, %v621
  %v623 = vpop.f32.mrf.mxu0
  %624 = vmatprep.mubr.f32.mxu0 0.0
  %625 = vmatmul.mubr.f32.gmra.mxu0 %v373
  %v626 = vpop.f32.mrf.mxu0
  %v627 = vadd.f32 0.0, %v626
  %v628 = vpop.f32.mrf.mxu0
  %629 = vmatprep.mubr.f32.mxu0 0.0
  %630 = vmatmul.mubr.f32.gmra.mxu0 %v376
  %v631 = vpop.f32.mrf.mxu0
  %v632 = vadd.f32 0.0, %v631
  %v633 = vpop.f32.mrf.mxu0
  %634 = vmatprep.mubr.f32.mxu0 0.0
  %635 = vmatmul.mubr.f32.gmra.mxu0 %v379
  %v636 = vpop.f32.mrf.mxu0
  %v637 = vadd.f32 0.0, %v636
  %v638 = vpop.f32.mrf.mxu0
  %639 = vmatprep.mubr.f32.mxu0 0.0
  %640 = vmatmul.mubr.f32.gmra.mxu0 %v382
  %v641 = vpop.f32.mrf.mxu0
  %v642 = vadd.f32 0.0, %v641
  %v643 = vpop.f32.mrf.mxu0
  %644 = vmatprep.mubr.f32.mxu0 0.0
  %645 = vmatmul.mubr.f32.gmra.mxu0 %v385
  %v646 = vpop.f32.mrf.mxu0
  %v647 = vadd.f32 0.0, %v646
  %v648 = vpop.f32.mrf.mxu0
  %649 = vmatprep.mubr.f32.mxu0 0.0
  %650 = vmatmul.mubr.f32.gmra.mxu0 %v388
  %v651 = vpop.f32.mrf.mxu0
  %v652 = vadd.f32 0.0, %v651
  %v653 = vpop.f32.mrf.mxu0
  %654 = vmatprep.mubr.f32.mxu0 0.0
  %655 = vmatmul.mubr.f32.gmra.mxu0 %v391
  %v656 = vpop.f32.mrf.mxu0
  %v657 = vadd.f32 0.0, %v656
  %v658 = vpop.f32.mrf.mxu0
  %659 = vmatprep.mubr.f32.mxu0 0.0
  %660 = vmatmul.mubr.f32.gmra.mxu0 %v394
  %v661 = vpop.f32.mrf.mxu0
  %v662 = vadd.f32 0.0, %v661
  %v663 = vpop.f32.mrf.mxu0
  %664 = vdwg.mxu0
  %v665 = vxor.u32 %v467, 2147483648
  %v666 = vxor.u32 %v472, 2147483648
  %v667 = vxor.u32 %v477, 2147483648
  %v668 = vxor.u32 %v482, 2147483648
  %v669 = vxor.u32 %v487, 2147483648
  %v670 = vxor.u32 %v492, 2147483648
  %v671 = vxor.u32 %v497, 2147483648
  %v672 = vxor.u32 %v502, 2147483648
  %v673 = vxor.u32 %v507, 2147483648
  %v674 = vxor.u32 %v512, 2147483648
  %v675 = vxor.u32 %v517, 2147483648
  %v676 = vxor.u32 %v522, 2147483648
  %v677 = vxor.u32 %v527, 2147483648
  %v678 = vxor.u32 %v532, 2147483648
  %v679 = vxor.u32 %v537, 2147483648
  %v680 = vxor.u32 %v542, 2147483648
  %v681 = vxor.u32 %v547, 2147483648
  %v682 = vxor.u32 %v552, 2147483648
  %v683 = vxor.u32 %v557, 2147483648
  %v684 = vxor.u32 %v562, 2147483648
  %v685 = vxor.u32 %v567, 2147483648
  %v686 = vxor.u32 %v572, 2147483648
  %v687 = vxor.u32 %v577, 2147483648
  %v688 = vxor.u32 %v582, 2147483648
  %v689 = vxor.u32 %v587, 2147483648
  %v690 = vxor.u32 %v592, 2147483648
  %v691 = vxor.u32 %v597, 2147483648
  %v692 = vxor.u32 %v602, 2147483648
  %v693 = vxor.u32 %v607, 2147483648
  %v694 = vxor.u32 %v612, 2147483648
  %v695 = vxor.u32 %v617, 2147483648
  %v696 = vxor.u32 %v622, 2147483648
  %v697 = vxor.u32 %v627, 2147483648
  %v698 = vxor.u32 %v632, 2147483648
  %v699 = vxor.u32 %v637, 2147483648
  %v700 = vxor.u32 %v642, 2147483648
  %v701 = vxor.u32 %v647, 2147483648
  %v702 = vxor.u32 %v652, 2147483648
  %v703 = vxor.u32 %v657, 2147483648
  %v704 = vxor.u32 %v662, 2147483648
  %v705 = vmul.f32 %v665, 1.442695
  %v706 = vpow.pop %v705
  %v707 = vmul.f32 %v666, 1.442695
  %v708 = vpow.pop %v707
  %v709 = vmul.f32 %v667, 1.442695
  %v710 = vpow.pop %v709
  %v711 = vmul.f32 %v668, 1.442695
  %v712 = vpow.pop %v711
  %v713 = vmul.f32 %v669, 1.442695
  %v714 = vpow.pop %v713
  %v715 = vmul.f32 %v670, 1.442695
  %v716 = vpow.pop %v715
  %v717 = vmul.f32 %v671, 1.442695
  %v718 = vpow.pop %v717
  %v719 = vmul.f32 %v672, 1.442695
  %v720 = vpow.pop %v719
  %v721 = vmul.f32 %v673, 1.442695
  %v722 = vpow.pop %v721
  %v723 = vmul.f32 %v674, 1.442695
  %v724 = vpow.pop %v723
  %v725 = vmul.f32 %v675, 1.442695
  %v726 = vpow.pop %v725
  %v727 = vmul.f32 %v676, 1.442695
  %v728 = vpow.pop %v727
  %v729 = vmul.f32 %v677, 1.442695
  %v730 = vpow.pop %v729
  %v731 = vmul.f32 %v678, 1.442695
  %v732 = vpow.pop %v731
  %v733 = vmul.f32 %v679, 1.442695
  %v734 = vpow.pop %v733
  %v735 = vmul.f32 %v680, 1.442695
  %v736 = vpow.pop %v735
  %v737 = vmul.f32 %v681, 1.442695
  %v738 = vpow.pop %v737
  %v739 = vmul.f32 %v682, 1.442695
  %v740 = vpow.pop %v739
  %v741 = vmul.f32 %v683, 1.442695
  %v742 = vpow.pop %v741
  %v743 = vmul.f32 %v684, 1.442695
  %v744 = vpow.pop %v743
  %v745 = vmul.f32 %v685, 1.442695
  %v746 = vpow.pop %v745
  %v747 = vmul.f32 %v686, 1.442695
  %v748 = vpow.pop %v747
  %v749 = vmul.f32 %v687, 1.442695
  %v750 = vpow.pop %v749
  %v751 = vmul.f32 %v688, 1.442695
  %v752 = vpow.pop %v751
  %v753 = vmul.f32 %v689, 1.442695
  %v754 = vpow.pop %v753
  %v755 = vmul.f32 %v690, 1.442695
  %v756 = vpow.pop %v755
  %v757 = vmul.f32 %v691, 1.442695
  %v758 = vpow.pop %v757
  %v759 = vmul.f32 %v692, 1.442695
  %v760 = vpow.pop %v759
  %v761 = vmul.f32 %v693, 1.442695
  %v762 = vpow.pop %v761
  %v763 = vmul.f32 %v694, 1.442695
  %v764 = vpow.pop %v763
  %v765 = vmul.f32 %v695, 1.442695
  %v766 = vpow.pop %v765
  %v767 = vmul.f32 %v696, 1.442695
  %v768 = vpow.pop %v767
  %v769 = vmul.f32 %v697, 1.442695
  %v770 = vpow.pop %v769
  %v771 = vmul.f32 %v698, 1.442695
  %v772 = vpow.pop %v771
  %v773 = vmul.f32 %v699, 1.442695
  %v774 = vpow.pop %v773
  %v775 = vmul.f32 %v700, 1.442695
  %v776 = vpow.pop %v775
  %v777 = vmul.f32 %v701, 1.442695
  %v778 = vpow.pop %v777
  %v779 = vmul.f32 %v702, 1.442695
  %v780 = vpow.pop %v779
  %v781 = vmul.f32 %v703, 1.442695
  %v782 = vpow.pop %v781
  %v783 = vmul.f32 %v704, 1.442695
  %v784 = vpow.pop %v783
  %v785 = vadd.f32 %v706, 1.0
  %v786 = vadd.f32 %v708, 1.0
  %v787 = vadd.f32 %v710, 1.0
  %v788 = vadd.f32 %v712, 1.0
  %v789 = vadd.f32 %v714, 1.0
  %v790 = vadd.f32 %v716, 1.0
  %v791 = vadd.f32 %v718, 1.0
  %v792 = vadd.f32 %v720, 1.0
  %v793 = vadd.f32 %v722, 1.0
  %v794 = vadd.f32 %v724, 1.0
  %v795 = vadd.f32 %v726, 1.0
  %v796 = vadd.f32 %v728, 1.0
  %v797 = vadd.f32 %v730, 1.0
  %v798 = vadd.f32 %v732, 1.0
  %v799 = vadd.f32 %v734, 1.0
  %v800 = vadd.f32 %v736, 1.0
  %v801 = vadd.f32 %v738, 1.0
  %v802 = vadd.f32 %v740, 1.0
  %v803 = vadd.f32 %v742, 1.0
  %v804 = vadd.f32 %v744, 1.0
  %v805 = vadd.f32 %v746, 1.0
  %v806 = vadd.f32 %v748, 1.0
  %v807 = vadd.f32 %v750, 1.0
  %v808 = vadd.f32 %v752, 1.0
  %v809 = vadd.f32 %v754, 1.0
  %v810 = vadd.f32 %v756, 1.0
  %v811 = vadd.f32 %v758, 1.0
  %v812 = vadd.f32 %v760, 1.0
  %v813 = vadd.f32 %v762, 1.0
  %v814 = vadd.f32 %v764, 1.0
  %v815 = vadd.f32 %v766, 1.0
  %v816 = vadd.f32 %v768, 1.0
  %v817 = vadd.f32 %v770, 1.0
  %v818 = vadd.f32 %v772, 1.0
  %v819 = vadd.f32 %v774, 1.0
  %v820 = vadd.f32 %v776, 1.0
  %v821 = vadd.f32 %v778, 1.0
  %v822 = vadd.f32 %v780, 1.0
  %v823 = vadd.f32 %v782, 1.0
  %v824 = vadd.f32 %v784, 1.0
  %v825 = vrcp.pop %v785
  %v826 = vmul.f32 1.0, %v825
  %v827 = vrcp.pop %v786
  %v828 = vmul.f32 1.0, %v827
  %v829 = vrcp.pop %v787
  %v830 = vmul.f32 1.0, %v829
  %v831 = vrcp.pop %v788
  %v832 = vmul.f32 1.0, %v831
  %v833 = vrcp.pop %v789
  %v834 = vmul.f32 1.0, %v833
  %v835 = vrcp.pop %v790
  %v836 = vmul.f32 1.0, %v835
  %v837 = vrcp.pop %v791
  %v838 = vmul.f32 1.0, %v837
  %v839 = vrcp.pop %v792
  %v840 = vmul.f32 1.0, %v839
  %v841 = vrcp.pop %v793
  %v842 = vmul.f32 1.0, %v841
  %v843 = vrcp.pop %v794
  %v844 = vmul.f32 1.0, %v843
  %v845 = vrcp.pop %v795
  %v846 = vmul.f32 1.0, %v845
  %v847 = vrcp.pop %v796
  %v848 = vmul.f32 1.0, %v847
  %v849 = vrcp.pop %v797
  %v850 = vmul.f32 1.0, %v849
  %v851 = vrcp.pop %v798
  %v852 = vmul.f32 1.0, %v851
  %v853 = vrcp.pop %v799
  %v854 = vmul.f32 1.0, %v853
  %v855 = vrcp.pop %v800
  %v856 = vmul.f32 1.0, %v855
  %v857 = vrcp.pop %v801
  %v858 = vmul.f32 1.0, %v857
  %v859 = vrcp.pop %v802
  %v860 = vmul.f32 1.0, %v859
  %v861 = vrcp.pop %v803
  %v862 = vmul.f32 1.0, %v861
  %v863 = vrcp.pop %v804
  %v864 = vmul.f32 1.0, %v863
  %v865 = vrcp.pop %v805
  %v866 = vmul.f32 1.0, %v865
  %v867 = vrcp.pop %v806
  %v868 = vmul.f32 1.0, %v867
  %v869 = vrcp.pop %v807
  %v870 = vmul.f32 1.0, %v869
  %v871 = vrcp.pop %v808
  %v872 = vmul.f32 1.0, %v871
  %v873 = vrcp.pop %v809
  %v874 = vmul.f32 1.0, %v873
  %v875 = vrcp.pop %v810
  %v876 = vmul.f32 1.0, %v875
  %v877 = vrcp.pop %v811
  %v878 = vmul.f32 1.0, %v877
  %v879 = vrcp.pop %v812
  %v880 = vmul.f32 1.0, %v879
  %v881 = vrcp.pop %v813
  %v882 = vmul.f32 1.0, %v881
  %v883 = vrcp.pop %v814
  %v884 = vmul.f32 1.0, %v883
  %v885 = vrcp.pop %v815
  %v886 = vmul.f32 1.0, %v885
  %v887 = vrcp.pop %v816
  %v888 = vmul.f32 1.0, %v887
  %v889 = vrcp.pop %v817
  %v890 = vmul.f32 1.0, %v889
  %v891 = vrcp.pop %v818
  %v892 = vmul.f32 1.0, %v891
  %v893 = vrcp.pop %v819
  %v894 = vmul.f32 1.0, %v893
  %v895 = vrcp.pop %v820
  %v896 = vmul.f32 1.0, %v895
  %v897 = vrcp.pop %v821
  %v898 = vmul.f32 1.0, %v897
  %v899 = vrcp.pop %v822
  %v900 = vmul.f32 1.0, %v899
  %v901 = vrcp.pop %v823
  %v902 = vmul.f32 1.0, %v901
  %v903 = vrcp.pop %v824
  %v904 = vmul.f32 1.0, %v903
  %s905 = smul.u32 8, 40
  %s906 = smul.u32 %s905, 2
  %s907 = sshll.u32 %s906, 4
  %908 = dma.done [#allocation3], %s907
  %v909 = vld [vmem:[#allocation2] sm:$0xff]
  %v910 = vld [vmem:[#allocation2 + $0x8] sm:$0xff]
  %v911 = vld [vmem:[#allocation2 + $0x10] sm:$0xff]
  %v912 = vld [vmem:[#allocation2 + $0x18] sm:$0xff]
  %v913 = vld [vmem:[#allocation2 + $0x20] sm:$0xff]
  %v914 = vld [vmem:[#allocation2 + $0x28] sm:$0xff]
  %v915 = vld [vmem:[#allocation2 + $0x30] sm:$0xff]
  %v916 = vld [vmem:[#allocation2 + $0x38] sm:$0xff]
  %v917 = vld [vmem:[#allocation2 + $0x40] sm:$0xff]
  %v918 = vld [vmem:[#allocation2 + $0x48] sm:$0xff]
  %v919 = vld [vmem:[#allocation2 + $0x50] sm:$0xff]
  %v920 = vld [vmem:[#allocation2 + $0x58] sm:$0xff]
  %v921 = vld [vmem:[#allocation2 + $0x60] sm:$0xff]
  %v922 = vld [vmem:[#allocation2 + $0x68] sm:$0xff]
  %v923 = vld [vmem:[#allocation2 + $0x70] sm:$0xff]
  %v924 = vld [vmem:[#allocation2 + $0x78] sm:$0xff]
  %v925 = vld [vmem:[#allocation2 + $0x80] sm:$0xff]
  %v926 = vld [vmem:[#allocation2 + $0x88] sm:$0xff]
  %v927 = vld [vmem:[#allocation2 + $0x90] sm:$0xff]
  %v928 = vld [vmem:[#allocation2 + $0x98] sm:$0xff]
  %v929 = vld [vmem:[#allocation2 + $0xa0] sm:$0xff]
  %v930 = vld [vmem:[#allocation2 + $0xa8] sm:$0xff]
  %v931 = vld [vmem:[#allocation2 + $0xb0] sm:$0xff]
  %v932 = vld [vmem:[#allocation2 + $0xb8] sm:$0xff]
  %v933 = vld [vmem:[#allocation2 + $0xc0] sm:$0xff]
  %v934 = vld [vmem:[#allocation2 + $0xc8] sm:$0xff]
  %v935 = vld [vmem:[#allocation2 + $0xd0] sm:$0xff]
  %v936 = vld [vmem:[#allocation2 + $0xd8] sm:$0xff]
  %v937 = vld [vmem:[#allocation2 + $0xe0] sm:$0xff]
  %v938 = vld [vmem:[#allocation2 + $0xe8] sm:$0xff]
  %v939 = vld [vmem:[#allocation2 + $0xf0] sm:$0xff]
  %v940 = vld [vmem:[#allocation2 + $0xf8] sm:$0xff]
  %v941 = vld [vmem:[#allocation2 + $0x100] sm:$0xff]
  %v942 = vld [vmem:[#allocation2 + $0x108] sm:$0xff]
  %v943 = vld [vmem:[#allocation2 + $0x110] sm:$0xff]
  %v944 = vld [vmem:[#allocation2 + $0x118] sm:$0xff]
  %v945 = vld [vmem:[#allocation2 + $0x120] sm:$0xff]
  %v946 = vld [vmem:[#allocation2 + $0x128] sm:$0xff]
  %v947 = vld [vmem:[#allocation2 + $0x130] sm:$0xff]
  %v948 = vld [vmem:[#allocation2 + $0x138] sm:$0xff]
  %v949 = vld [vmem:[#allocation2 + $0x140] sm:$0xff]
  %v950 = vld [vmem:[#allocation2 + $0x148] sm:$0xff]
  %v951 = vld [vmem:[#allocation2 + $0x150] sm:$0xff]
  %v952 = vld [vmem:[#allocation2 + $0x158] sm:$0xff]
  %v953 = vld [vmem:[#allocation2 + $0x160] sm:$0xff]
  %v954 = vld [vmem:[#allocation2 + $0x168] sm:$0xff]
  %v955 = vld [vmem:[#allocation2 + $0x170] sm:$0xff]
  %v956 = vld [vmem:[#allocation2 + $0x178] sm:$0xff]
  %v957 = vld [vmem:[#allocation2 + $0x180] sm:$0xff]
  %v958 = vld [vmem:[#allocation2 + $0x188] sm:$0xff]
  %v959 = vld [vmem:[#allocation2 + $0x190] sm:$0xff]
  %v960 = vld [vmem:[#allocation2 + $0x198] sm:$0xff]
  %v961 = vld [vmem:[#allocation2 + $0x1a0] sm:$0xff]
  %v962 = vld [vmem:[#allocation2 + $0x1a8] sm:$0xff]
  %v963 = vld [vmem:[#allocation2 + $0x1b0] sm:$0xff]
  %v964 = vld [vmem:[#allocation2 + $0x1b8] sm:$0xff]
  %v965 = vld [vmem:[#allocation2 + $0x1c0] sm:$0xff]
  %v966 = vld [vmem:[#allocation2 + $0x1c8] sm:$0xff]
  %v967 = vld [vmem:[#allocation2 + $0x1d0] sm:$0xff]
  %v968 = vld [vmem:[#allocation2 + $0x1d8] sm:$0xff]
  %v969 = vld [vmem:[#allocation2 + $0x1e0] sm:$0xff]
  %v970 = vld [vmem:[#allocation2 + $0x1e8] sm:$0xff]
  %v971 = vld [vmem:[#allocation2 + $0x1f0] sm:$0xff]
  %v972 = vld [vmem:[#allocation2 + $0x1f8] sm:$0xff]
  %v973 = vld [vmem:[#allocation2 + $0x200] sm:$0xff]
  %v974 = vld [vmem:[#allocation2 + $0x208] sm:$0xff]
  %v975 = vld [vmem:[#allocation2 + $0x210] sm:$0xff]
  %v976 = vld [vmem:[#allocation2 + $0x218] sm:$0xff]
  %v977 = vld [vmem:[#allocation2 + $0x220] sm:$0xff]
  %v978 = vld [vmem:[#allocation2 + $0x228] sm:$0xff]
  %v979 = vld [vmem:[#allocation2 + $0x230] sm:$0xff]
  %v980 = vld [vmem:[#allocation2 + $0x238] sm:$0xff]
  %v981 = vld [vmem:[#allocation2 + $0x240] sm:$0xff]
  %v982 = vld [vmem:[#allocation2 + $0x248] sm:$0xff]
  %v983 = vld [vmem:[#allocation2 + $0x250] sm:$0xff]
  %v984 = vld [vmem:[#allocation2 + $0x258] sm:$0xff]
  %v985 = vld [vmem:[#allocation2 + $0x260] sm:$0xff]
  %v986 = vld [vmem:[#allocation2 + $0x268] sm:$0xff]
  %v987 = vld [vmem:[#allocation2 + $0x270] sm:$0xff]
  %v988 = vld [vmem:[#allocation2 + $0x278] sm:$0xff]
  %990 = vset.pattern.permute.xlu0 0
  %991 = vperm.xlu0 %990, %v826
  %v992 = vpop.permute.xlu0 %991
  %995 = vset.pattern.permute.xlu0 0
  %996 = vperm.xlu0 %995, %v828
  %v997 = vpop.permute.xlu0 %996
  %1000 = vset.pattern.permute.xlu0 0
  %1001 = vperm.xlu0 %1000, %v830
  %v1002 = vpop.permute.xlu0 %1001
  %1005 = vset.pattern.permute.xlu0 0
  %1006 = vperm.xlu0 %1005, %v832
  %v1007 = vpop.permute.xlu0 %1006
  %1010 = vset.pattern.permute.xlu0 0
  %1011 = vperm.xlu0 %1010, %v834
  %v1012 = vpop.permute.xlu0 %1011
  %1015 = vset.pattern.permute.xlu0 0
  %1016 = vperm.xlu0 %1015, %v836
  %v1017 = vpop.permute.xlu0 %1016
  %1020 = vset.pattern.permute.xlu0 0
  %1021 = vperm.xlu0 %1020, %v838
  %v1022 = vpop.permute.xlu0 %1021
  %1025 = vset.pattern.permute.xlu0 0
  %1026 = vperm.xlu0 %1025, %v840
  %v1027 = vpop.permute.xlu0 %1026
  %1030 = vset.pattern.permute.xlu0 0
  %1031 = vperm.xlu0 %1030, %v842
  %v1032 = vpop.permute.xlu0 %1031
  %1035 = vset.pattern.permute.xlu0 0
  %1036 = vperm.xlu0 %1035, %v844
  %v1037 = vpop.permute.xlu0 %1036
  %1040 = vset.pattern.permute.xlu0 0
  %1041 = vperm.xlu0 %1040, %v846
  %v1042 = vpop.permute.xlu0 %1041
  %1045 = vset.pattern.permute.xlu0 0
  %1046 = vperm.xlu0 %1045, %v848
  %v1047 = vpop.permute.xlu0 %1046
  %1050 = vset.pattern.permute.xlu0 0
  %1051 = vperm.xlu0 %1050, %v850
  %v1052 = vpop.permute.xlu0 %1051
  %1055 = vset.pattern.permute.xlu0 0
  %1056 = vperm.xlu0 %1055, %v852
  %v1057 = vpop.permute.xlu0 %1056
  %1060 = vset.pattern.permute.xlu0 0
  %1061 = vperm.xlu0 %1060, %v854
  %v1062 = vpop.permute.xlu0 %1061
  %1065 = vset.pattern.permute.xlu0 0
  %1066 = vperm.xlu0 %1065, %v856
  %v1067 = vpop.permute.xlu0 %1066
  %1070 = vset.pattern.permute.xlu0 0
  %1071 = vperm.xlu0 %1070, %v858
  %v1072 = vpop.permute.xlu0 %1071
  %1075 = vset.pattern.permute.xlu0 0
  %1076 = vperm.xlu0 %1075, %v860
  %v1077 = vpop.permute.xlu0 %1076
  %1080 = vset.pattern.permute.xlu0 0
  %1081 = vperm.xlu0 %1080, %v862
  %v1082 = vpop.permute.xlu0 %1081
  %1085 = vset.pattern.permute.xlu0 0
  %1086 = vperm.xlu0 %1085, %v864
  %v1087 = vpop.permute.xlu0 %1086
  %1090 = vset.pattern.permute.xlu0 0
  %1091 = vperm.xlu0 %1090, %v866
  %v1092 = vpop.permute.xlu0 %1091
  %1095 = vset.pattern.permute.xlu0 0
  %1096 = vperm.xlu0 %1095, %v868
  %v1097 = vpop.permute.xlu0 %1096
  %1100 = vset.pattern.permute.xlu0 0
  %1101 = vperm.xlu0 %1100, %v870
  %v1102 = vpop.permute.xlu0 %1101
  %1105 = vset.pattern.permute.xlu0 0
  %1106 = vperm.xlu0 %1105, %v872
  %v1107 = vpop.permute.xlu0 %1106
  %1110 = vset.pattern.permute.xlu0 0
  %1111 = vperm.xlu0 %1110, %v874
  %v1112 = vpop.permute.xlu0 %1111
  %1115 = vset.pattern.permute.xlu0 0
  %1116 = vperm.xlu0 %1115, %v876
  %v1117 = vpop.permute.xlu0 %1116
  %1120 = vset.pattern.permute.xlu0 0
  %1121 = vperm.xlu0 %1120, %v878
  %v1122 = vpop.permute.xlu0 %1121
  %1125 = vset.pattern.permute.xlu0 0
  %1126 = vperm.xlu0 %1125, %v880
  %v1127 = vpop.permute.xlu0 %1126
  %1130 = vset.pattern.permute.xlu0 0
  %1131 = vperm.xlu0 %1130, %v882
  %v1132 = vpop.permute.xlu0 %1131
  %1135 = vset.pattern.permute.xlu0 0
  %1136 = vperm.xlu0 %1135, %v884
  %v1137 = vpop.permute.xlu0 %1136
  %1140 = vset.pattern.permute.xlu0 0
  %1141 = vperm.xlu0 %1140, %v886
  %v1142 = vpop.permute.xlu0 %1141
  %1145 = vset.pattern.permute.xlu0 0
  %1146 = vperm.xlu0 %1145, %v888
  %v1147 = vpop.permute.xlu0 %1146
  %1150 = vset.pattern.permute.xlu0 0
  %1151 = vperm.xlu0 %1150, %v890
  %v1152 = vpop.permute.xlu0 %1151
  %1155 = vset.pattern.permute.xlu0 0
  %1156 = vperm.xlu0 %1155, %v892
  %v1157 = vpop.permute.xlu0 %1156
  %1160 = vset.pattern.permute.xlu0 0
  %1161 = vperm.xlu0 %1160, %v894
  %v1162 = vpop.permute.xlu0 %1161
  %1165 = vset.pattern.permute.xlu0 0
  %1166 = vperm.xlu0 %1165, %v896
  %v1167 = vpop.permute.xlu0 %1166
  %1170 = vset.pattern.permute.xlu0 0
  %1171 = vperm.xlu0 %1170, %v898
  %v1172 = vpop.permute.xlu0 %1171
  %1175 = vset.pattern.permute.xlu0 0
  %1176 = vperm.xlu0 %1175, %v900
  %v1177 = vpop.permute.xlu0 %1176
  %1180 = vset.pattern.permute.xlu0 0
  %1181 = vperm.xlu0 %1180, %v902
  %v1182 = vpop.permute.xlu0 %1181
  %1185 = vset.pattern.permute.xlu0 0
  %1186 = vperm.xlu0 %1185, %v904
  %v1187 = vpop.permute.xlu0 %1186
  %v1189 = vmul.f32 %v909, %v992
  %v1190 = vmul.f32 %v910, %v992
  %v1191 = vmul.f32 %v911, %v997
  %v1192 = vmul.f32 %v912, %v997
  %v1193 = vmul.f32 %v913, %v1002
  %v1194 = vmul.f32 %v914, %v1002
  %v1195 = vmul.f32 %v915, %v1007
  %v1196 = vmul.f32 %v916, %v1007
  %v1197 = vmul.f32 %v917, %v1012
  %v1198 = vmul.f32 %v918, %v1012
  %v1199 = vmul.f32 %v919, %v1017
  %v1200 = vmul.f32 %v920, %v1017
  %v1201 = vmul.f32 %v921, %v1022
  %v1202 = vmul.f32 %v922, %v1022
  %v1203 = vmul.f32 %v923, %v1027
  %v1204 = vmul.f32 %v924, %v1027
  %v1205 = vmul.f32 %v925, %v1032
  %v1206 = vmul.f32 %v926, %v1032
  %v1207 = vmul.f32 %v927, %v1037
  %v1208 = vmul.f32 %v928, %v1037
  %v1209 = vmul.f32 %v929, %v1042
  %v1210 = vmul.f32 %v930, %v1042
  %v1211 = vmul.f32 %v931, %v1047
  %v1212 = vmul.f32 %v932, %v1047
  %v1213 = vmul.f32 %v933, %v1052
  %v1214 = vmul.f32 %v934, %v1052
  %v1215 = vmul.f32 %v935, %v1057
  %v1216 = vmul.f32 %v936, %v1057
  %v1217 = vmul.f32 %v937, %v1062
  %v1218 = vmul.f32 %v938, %v1062
  %v1219 = vmul.f32 %v939, %v1067
  %v1220 = vmul.f32 %v940, %v1067
  %v1221 = vmul.f32 %v941, %v1072
  %v1222 = vmul.f32 %v942, %v1072
  %v1223 = vmul.f32 %v943, %v1077
  %v1224 = vmul.f32 %v944, %v1077
  %v1225 = vmul.f32 %v945, %v1082
  %v1226 = vmul.f32 %v946, %v1082
  %v1227 = vmul.f32 %v947, %v1087
  %v1228 = vmul.f32 %v948, %v1087
  %v1229 = vmul.f32 %v949, %v1092
  %v1230 = vmul.f32 %v950, %v1092
  %v1231 = vmul.f32 %v951, %v1097
  %v1232 = vmul.f32 %v952, %v1097
  %v1233 = vmul.f32 %v953, %v1102
  %v1234 = vmul.f32 %v954, %v1102
  %v1235 = vmul.f32 %v955, %v1107
  %v1236 = vmul.f32 %v956, %v1107
  %v1237 = vmul.f32 %v957, %v1112
  %v1238 = vmul.f32 %v958, %v1112
  %v1239 = vmul.f32 %v959, %v1117
  %v1240 = vmul.f32 %v960, %v1117
  %v1241 = vmul.f32 %v961, %v1122
  %v1242 = vmul.f32 %v962, %v1122
  %v1243 = vmul.f32 %v963, %v1127
  %v1244 = vmul.f32 %v964, %v1127
  %v1245 = vmul.f32 %v965, %v1132
  %v1246 = vmul.f32 %v966, %v1132
  %v1247 = vmul.f32 %v967, %v1137
  %v1248 = vmul.f32 %v968, %v1137
  %v1249 = vmul.f32 %v969, %v1142
  %v1250 = vmul.f32 %v970, %v1142
  %v1251 = vmul.f32 %v971, %v1147
  %v1252 = vmul.f32 %v972, %v1147
  %v1253 = vmul.f32 %v973, %v1152
  %v1254 = vmul.f32 %v974, %v1152
  %v1255 = vmul.f32 %v975, %v1157
  %v1256 = vmul.f32 %v976, %v1157
  %v1257 = vmul.f32 %v977, %v1162
  %v1258 = vmul.f32 %v978, %v1162
  %v1259 = vmul.f32 %v979, %v1167
  %v1260 = vmul.f32 %v980, %v1167
  %v1261 = vmul.f32 %v981, %v1172
  %v1262 = vmul.f32 %v982, %v1172
  %v1263 = vmul.f32 %v983, %v1177
  %v1264 = vmul.f32 %v984, %v1177
  %v1265 = vmul.f32 %v985, %v1182
  %v1266 = vmul.f32 %v986, %v1182
  %v1267 = vmul.f32 %v987, %v1187
  %v1268 = vmul.f32 %v988, %v1187
  %1269 = vst [vmem:[%s3] sm:$0xff] %v1189
  %vm1270 = vcmask 556032
  %1271 = vst.msk [vmem:[%s3 + $0x8] sm:$0xff] %vm1270, %v1190
  %1272 = vst [vmem:[%s3 + $0x10] sm:$0xff] %v1191
  %1273 = vst.msk [vmem:[%s3 + $0x18] sm:$0xff] %vm1270, %v1192
  %1274 = vst [vmem:[%s3 + $0x20] sm:$0xff] %v1193
  %1275 = vst.msk [vmem:[%s3 + $0x28] sm:$0xff] %vm1270, %v1194
  %1276 = vst [vmem:[%s3 + $0x30] sm:$0xff] %v1195
  %1277 = vst.msk [vmem:[%s3 + $0x38] sm:$0xff] %vm1270, %v1196
  %1278 = vst [vmem:[%s3 + $0x40] sm:$0xff] %v1197
  %1279 = vst.msk [vmem:[%s3 + $0x48] sm:$0xff] %vm1270, %v1198
  %1280 = vst [vmem:[%s3 + $0x50] sm:$0xff] %v1199
  %1281 = vst.msk [vmem:[%s3 + $0x58] sm:$0xff] %vm1270, %v1200
  %1282 = vst [vmem:[%s3 + $0x60] sm:$0xff] %v1201
  %1283 = vst.msk [vmem:[%s3 + $0x68] sm:$0xff] %vm1270, %v1202
  %1284 = vst [vmem:[%s3 + $0x70] sm:$0xff] %v1203
  %1285 = vst.msk [vmem:[%s3 + $0x78] sm:$0xff] %vm1270, %v1204
  %1286 = vst [vmem:[%s3 + $0x80] sm:$0xff] %v1205
  %1287 = vst.msk [vmem:[%s3 + $0x88] sm:$0xff] %vm1270, %v1206
  %1288 = vst [vmem:[%s3 + $0x90] sm:$0xff] %v1207
  %1289 = vst.msk [vmem:[%s3 + $0x98] sm:$0xff] %vm1270, %v1208
  %1290 = vst [vmem:[%s3 + $0xa0] sm:$0xff] %v1209
  %1291 = vst.msk [vmem:[%s3 + $0xa8] sm:$0xff] %vm1270, %v1210
  %1292 = vst [vmem:[%s3 + $0xb0] sm:$0xff] %v1211
  %1293 = vst.msk [vmem:[%s3 + $0xb8] sm:$0xff] %vm1270, %v1212
  %1294 = vst [vmem:[%s3 + $0xc0] sm:$0xff] %v1213
  %1295 = vst.msk [vmem:[%s3 + $0xc8] sm:$0xff] %vm1270, %v1214
  %1296 = vst [vmem:[%s3 + $0xd0] sm:$0xff] %v1215
  %1297 = vst.msk [vmem:[%s3 + $0xd8] sm:$0xff] %vm1270, %v1216
  %1298 = vst [vmem:[%s3 + $0xe0] sm:$0xff] %v1217
  %1299 = vst.msk [vmem:[%s3 + $0xe8] sm:$0xff] %vm1270, %v1218
  %1300 = vst [vmem:[%s3 + $0xf0] sm:$0xff] %v1219
  %1301 = vst.msk [vmem:[%s3 + $0xf8] sm:$0xff] %vm1270, %v1220
  %1302 = vst [vmem:[%s3 + $0x100] sm:$0xff] %v1221
  %1303 = vst.msk [vmem:[%s3 + $0x108] sm:$0xff] %vm1270, %v1222
  %1304 = vst [vmem:[%s3 + $0x110] sm:$0xff] %v1223
  %1305 = vst.msk [vmem:[%s3 + $0x118] sm:$0xff] %vm1270, %v1224
  %1306 = vst [vmem:[%s3 + $0x120] sm:$0xff] %v1225
  %1307 = vst.msk [vmem:[%s3 + $0x128] sm:$0xff] %vm1270, %v1226
  %1308 = vst [vmem:[%s3 + $0x130] sm:$0xff] %v1227
  %1309 = vst.msk [vmem:[%s3 + $0x138] sm:$0xff] %vm1270, %v1228
  %1310 = vst [vmem:[%s3 + $0x140] sm:$0xff] %v1229
  %1311 = vst.msk [vmem:[%s3 + $0x148] sm:$0xff] %vm1270, %v1230
  %1312 = vst [vmem:[%s3 + $0x150] sm:$0xff] %v1231
  %1313 = vst.msk [vmem:[%s3 + $0x158] sm:$0xff] %vm1270, %v1232
  %1314 = vst [vmem:[%s3 + $0x160] sm:$0xff] %v1233
  %1315 = vst.msk [vmem:[%s3 + $0x168] sm:$0xff] %vm1270, %v1234
  %1316 = vst [vmem:[%s3 + $0x170] sm:$0xff] %v1235
  %1317 = vst.msk [vmem:[%s3 + $0x178] sm:$0xff] %vm1270, %v1236
  %1318 = vst [vmem:[%s3 + $0x180] sm:$0xff] %v1237
  %1319 = vst.msk [vmem:[%s3 + $0x188] sm:$0xff] %vm1270, %v1238
  %1320 = vst [vmem:[%s3 + $0x190] sm:$0xff] %v1239
  %1321 = vst.msk [vmem:[%s3 + $0x198] sm:$0xff] %vm1270, %v1240
  %1322 = vst [vmem:[%s3 + $0x1a0] sm:$0xff] %v1241
  %1323 = vst.msk [vmem:[%s3 + $0x1a8] sm:$0xff] %vm1270, %v1242
  %1324 = vst [vmem:[%s3 + $0x1b0] sm:$0xff] %v1243
  %1325 = vst.msk [vmem:[%s3 + $0x1b8] sm:$0xff] %vm1270, %v1244
  %1326 = vst [vmem:[%s3 + $0x1c0] sm:$0xff] %v1245
  %1327 = vst.msk [vmem:[%s3 + $0x1c8] sm:$0xff] %vm1270, %v1246
  %1328 = vst [vmem:[%s3 + $0x1d0] sm:$0xff] %v1247
  %1329 = vst.msk [vmem:[%s3 + $0x1d8] sm:$0xff] %vm1270, %v1248
  %1330 = vst [vmem:[%s3 + $0x1e0] sm:$0xff] %v1249
  %1331 = vst.msk [vmem:[%s3 + $0x1e8] sm:$0xff] %vm1270, %v1250
  %1332 = vst [vmem:[%s3 + $0x1f0] sm:$0xff] %v1251
  %1333 = vst.msk [vmem:[%s3 + $0x1f8] sm:$0xff] %vm1270, %v1252
  %1334 = vst [vmem:[%s3 + $0x200] sm:$0xff] %v1253
  %1335 = vst.msk [vmem:[%s3 + $0x208] sm:$0xff] %vm1270, %v1254
  %1336 = vst [vmem:[%s3 + $0x210] sm:$0xff] %v1255
  %1337 = vst.msk [vmem:[%s3 + $0x218] sm:$0xff] %vm1270, %v1256
  %1338 = vst [vmem:[%s3 + $0x220] sm:$0xff] %v1257
  %1339 = vst.msk [vmem:[%s3 + $0x228] sm:$0xff] %vm1270, %v1258
  %1340 = vst [vmem:[%s3 + $0x230] sm:$0xff] %v1259
  %1341 = vst.msk [vmem:[%s3 + $0x238] sm:$0xff] %vm1270, %v1260
  %1342 = vst [vmem:[%s3 + $0x240] sm:$0xff] %v1261
  %1343 = vst.msk [vmem:[%s3 + $0x248] sm:$0xff] %vm1270, %v1262
  %1344 = vst [vmem:[%s3 + $0x250] sm:$0xff] %v1263
  %1345 = vst.msk [vmem:[%s3 + $0x258] sm:$0xff] %vm1270, %v1264
  %1346 = vst [vmem:[%s3 + $0x260] sm:$0xff] %v1265
  %1347 = vst.msk [vmem:[%s3 + $0x268] sm:$0xff] %vm1270, %v1266
  %1348 = vst [vmem:[%s3 + $0x270] sm:$0xff] %v1267
  %1349 = vst.msk [vmem:[%s3 + $0x278] sm:$0xff] %vm1270, %v1268
  // Predicated region
  $region44: #{tpu_custom_call.1} parent=0 // pred_check
    _
  $region45: #{tpu_custom_call.1} parent=0 // pred_check_branch
    %1351 = sbr.rel (0) target = $region47
  $region46: #{tpu_custom_call.1} parent=0 // pred_region
    _
  $region47: #{tpu_custom_call.1} parent=0 // pred_fallthru
    _
  // Predicated region
  $region48: #{tpu_custom_call.1} parent=0 // pred_check
    _
  $region49: #{tpu_custom_call.1} parent=0 // pred_check_branch
    %1353 = sbr.rel (0) target = $region51
  $region50: #{tpu_custom_call.1} parent=0 // pred_region
    _
  $region51: #{tpu_custom_call.1} parent=0 // pred_fallthru
    _
  %1354 = vsyncmov [#allocation3]
  %s1355 = vpop.sfrf %1354
  %p1356 = scmp.eq.s32.totalorder %s1355, 0
  %p1357 = pneg %p1356
  %1359 = shalt.err (%p1357)

</llo_original>
